<compile_context>
chip_gen: v6e
topology: v6e:2x2x1
jax: 0.10.0
libtpu: 0.0.40
codegen_flags: <defaults>
</compile_context>

<pallas_src>
import math

import jax
import jax.numpy as jnp
from jax.experimental import pallas as pl
from jax.experimental.pallas import tpu as pltpu


# Fixed temporal vocabulary sizes (freq='h' -> no minute embedding).
_MONTH, _DAY, _WEEKDAY, _HOUR = 13, 32, 7, 24
_TEMP_TOTAL = _MONTH + _DAY + _WEEKDAY + _HOUR          # 76
_OFF_MONTH = 0
_OFF_DAY = _MONTH                                        # 13
_OFF_WEEKDAY = _MONTH + _DAY                             # 45
_OFF_HOUR = _MONTH + _DAY + _WEEKDAY                     # 52


def data_embedding_kernel(x_ref, mark_ref, w_ref, pos_ref, o_ref):
    # x_ref:    (TB, L, C)      f32  values
    # mark_ref: (TB, L, 4)      i32  [month, day, weekday, hour]
    # w_ref:    (3*C + 76, Dp)  bf16 fused [conv k=0,1,2 ; temporal tables]
    # pos_ref:  (L, Dp)         f32  positional slice
    # o_ref:    (TB, L, Dp)     f32
    tb, seq, _ = x_ref.shape

    x = x_ref[...]
    # Circular conv, padding=1, kernel=3 (per-batch shifts along L):
    #   out[t] = x[(t-1)%L] @ w0 + x[t] @ w1 + x[(t+1)%L] @ w2
    x_prev = jnp.concatenate([x[:, seq - 1:, :], x[:, :seq - 1, :]], axis=1)
    x_next = jnp.concatenate([x[:, 1:, :], x[:, :1, :]], axis=1)
    xc = jnp.concatenate([x_prev, x, x_next], axis=-1).astype(jnp.bfloat16)

    # One-hot encode the 4 calendar fields into one 76-wide slab so the fixed
    # temporal embedding lookups become part of the same MXU matmul.
    marks = mark_ref[...]
    j = jax.lax.broadcasted_iota(jnp.int32, (tb, seq, _TEMP_TOTAL), 2)
    onehot = ((j == (marks[:, :, 0:1] + _OFF_MONTH))
              | (j == (marks[:, :, 1:2] + _OFF_DAY))
              | (j == (marks[:, :, 2:3] + _OFF_WEEKDAY))
              | (j == (marks[:, :, 3:4] + _OFF_HOUR))).astype(jnp.bfloat16)

    feat = jnp.concatenate([xc, onehot], axis=-1)        # (TB, L, 3C+76) bf16
    k = feat.shape[-1]
    acc = jnp.dot(feat.reshape(tb * seq, k), w_ref[...],
                  preferred_element_type=jnp.float32)    # (TB*L, Dp) f32
    d = acc.shape[-1]
    out = acc.reshape(tb, seq, d) + pos_ref[...][None, :, :]
    # TODO(synk): dropout is the eval-mode identity here; training-mode dropout
    # would draw a mask via pltpu.prng_seed / pltpu.prng_random_bits right here.
    o_ref[...] = out.astype(o_ref.dtype)


def data_embedding(x, x_mark, w_conv, temp_tab, pos_tab, *, block_b=None):
    """Fused DataEmbedding forward.

    x:        (B, L, c_in) f32;  x_mark: (B, L, 4) i32 [month, day, weekday, hour]
    w_conv:   (3, c_in, D) f32 with w_conv[k, c, d] == torch_conv_weight[d, c, k]
    temp_tab: (76, D) f32 stacked fixed tables [month;day;weekday;hour]
    pos_tab:  (>=L, D) f32 normalized sincos positional table
    returns:  (B, L, D) f32
    """
    B, L, C = x.shape
    D = w_conv.shape[-1]
    assert x_mark.shape == (B, L, 4)
    assert temp_tab.shape == (_TEMP_TOTAL, D)
    assert pos_tab.shape[0] >= L and pos_tab.shape[1] == D

    # Lane-dense output: pad D to a multiple of 128 (avoids masked vst.msk).
    Dp = ((D + 127) // 128) * 128
    w_fused = jnp.concatenate(
        [w_conv.reshape(3 * C, D), temp_tab.astype(w_conv.dtype)], axis=0)
    pos = pos_tab[:L]
    if Dp != D:
        w_fused = jnp.pad(w_fused, ((0, 0), (0, Dp - D)))
        pos = jnp.pad(pos, ((0, 0), (0, Dp - D)))
    w_fused = w_fused.astype(jnp.bfloat16)     # bf16 MXU path, f32 accumulation
    pos = pos.astype(jnp.float32)

    # Batch tile: aim for >= ~512 matmul rows per step, keep >= 2 grid steps
    # when possible (v7x has 2 TensorCores), and make it divide B.
    if block_b is None:
        block_b = max(1, min(B, 512 // max(L, 1)))
        if B // block_b < 2 and B >= 2:
            block_b = max(1, B // 2)
    while B % block_b:
        block_b -= 1
    grid = (B // block_b,)

    out = pl.pallas_call(
        data_embedding_kernel,
        out_shape=jax.ShapeDtypeStruct((B, L, Dp), jnp.float32),
        grid_spec=pltpu.PrefetchScalarGridSpec(
            num_scalar_prefetch=0,
            grid=grid,
            in_specs=[
                pl.BlockSpec((block_b, L, C), lambda b: (b, 0, 0)),
                pl.BlockSpec((block_b, L, 4), lambda b: (b, 0, 0)),
                pl.BlockSpec((3 * C + _TEMP_TOTAL, Dp), lambda b: (0, 0)),
                pl.BlockSpec((L, Dp), lambda b: (0, 0)),
            ],
            out_specs=pl.BlockSpec((block_b, L, Dp), lambda b: (b, 0, 0)),
        ),
        compiler_params=pltpu.CompilerParams(
            dimension_semantics=("parallel",),
            vmem_limit_bytes=32 * 1024 * 1024,
        ),
    )(x.astype(jnp.float32), x_mark.astype(jnp.int32), w_fused, pos)
    return out[..., :D]


# ----------------------------- parameter prep -------------------------------

def sincos_table(n, d):
    position = jnp.arange(n, dtype=jnp.float32)[:, None]
    div_term = jnp.exp(jnp.arange(0, d, 2, dtype=jnp.float32)
                       * (-math.log(10000.0) / d))
    ang = position * div_term
    tab = jnp.zeros((n, d), jnp.float32)
    tab = tab.at[:, 0::2].set(jnp.sin(ang))
    tab = tab.at[:, 1::2].set(jnp.cos(ang))
    return tab


def make_data_embedding_params(c_in, d_model, key, q_len=5000):
    # TokenEmbedding Conv1d weight: kaiming_normal_(fan_in, leaky_relu).
    fan_in = c_in * 3
    gain = math.sqrt(2.0 / (1.0 + 0.01 ** 2))
    std = gain / math.sqrt(fan_in)
    w_conv = std * jax.random.normal(key, (3, c_in, d_model), dtype=jnp.float32)

    # TemporalEmbedding (embed_type='fixed', freq='h'): fixed sincos tables.
    temp_tab = jnp.concatenate([sincos_table(_MONTH, d_model),
                                sincos_table(_DAY, d_model),
                                sincos_table(_WEEKDAY, d_model),
                                sincos_table(_HOUR, d_model)], axis=0)

    # PositionalEmbedding ('sincos', normalize=True over the full q_len table).
    pe = sincos_table(q_len, d_model)
    pe = pe - jnp.mean(pe)
    pe = pe / (jnp.std(pe, ddof=1) * 10.0)
    return w_conv, temp_tab, pe


# ------------------------------- reference ----------------------------------

def reference_data_embedding(x, x_mark, w_conv, temp_tab, pos_tab):
    B, L, C = x.shape
    x_prev = jnp.roll(x, 1, axis=1)
    x_next = jnp.roll(x, -1, axis=1)
    value = (jnp.einsum("blc,cd->bld", x_prev, w_conv[0])
             + jnp.einsum("blc,cd->bld", x, w_conv[1])
             + jnp.einsum("blc,cd->bld", x_next, w_conv[2]))
    month_t = temp_tab[_OFF_MONTH:_OFF_MONTH + _MONTH]
    day_t = temp_tab[_OFF_DAY:_OFF_DAY + _DAY]
    weekday_t = temp_tab[_OFF_WEEKDAY:_OFF_WEEKDAY + _WEEKDAY]
    hour_t = temp_tab[_OFF_HOUR:_OFF_HOUR + _HOUR]
    temporal = (month_t[x_mark[:, :, 0]] + day_t[x_mark[:, :, 1]]
                + weekday_t[x_mark[:, :, 2]] + hour_t[x_mark[:, :, 3]])
    pos = pos_tab[:L][None, :, :]
    return value + temporal + pos            # dropout: eval-mode identity


if __name__ == "__main__":
    # d_model=128 is the module's PositionalEmbedding default and lane-dense.
    B, L, c_in, d_model = 8, 32, 7, 128

    key = jax.random.PRNGKey(0)
    kx, kw, km = jax.random.split(key, 3)

    x = jax.random.normal(kx, (B, L, c_in), dtype=jnp.float32)
    km1, km2, km3, km4 = jax.random.split(km, 4)
    x_mark = jnp.concatenate([
        jax.random.randint(km1, (B, L, 1), 0, _MONTH),
        jax.random.randint(km2, (B, L, 1), 0, _DAY),
        jax.random.randint(km3, (B, L, 1), 0, _WEEKDAY),
        jax.random.randint(km4, (B, L, 1), 0, _HOUR),
    ], axis=-1).astype(jnp.int32)

    w_conv, temp_tab, pos_tab = make_data_embedding_params(c_in, d_model, kw)

    out = data_embedding(x, x_mark, w_conv, temp_tab, pos_tab)
    out = jax.block_until_ready(out)

    ref = reference_data_embedding(x, x_mark, w_conv, temp_tab, pos_tab)
    assert out.shape == (B, L, d_model)
    # Kernel uses the bf16 MXU path (f32 accumulation); compare to the pure-f32
    # reference with a tolerance that still catches any structural error.
    max_err = float(jnp.max(jnp.abs(out - ref)))
    assert jnp.allclose(out, ref, atol=1e-1, rtol=5e-2), (
        f"mismatch vs reference, max abs err={max_err}")

    print("KERNEL_OK")
</pallas_src>

<mosaic_0001>
module attributes {stable_mosaic.version = 11 : i64} {
  func.func @data_embedding_kernel(%arg0: i32, %arg1: memref<4x32x7xf32, #tpu.memory_space<vmem>>, %arg2: memref<4x32x4xi32, #tpu.memory_space<vmem>>, %arg3: memref<97x128xbf16, #tpu.memory_space<vmem>>, %arg4: memref<32x128xf32, #tpu.memory_space<vmem>>, %arg5: memref<4x32x128xf32, #tpu.memory_space<vmem>>) attributes {dimension_semantics = [#tpu.dimension_semantics<parallel>], iteration_bounds = array<i64: 2>, scalar_prefetch = 0 : i64, scratch_operands = 0 : i64, tpu.core_type = #tpu.core_type<tc>, window_params = [{transform_indices = @transform_0, window_bounds = array<i64: 4, 32, 7>}, {transform_indices = @transform_1, window_bounds = array<i64: 4, 32, 4>}, {pipeline_mode = #tpu.pipeline_mode<synchronous>, transform_indices = @transform_2, window_bounds = array<i64: 97, 128>}, {pipeline_mode = #tpu.pipeline_mode<synchronous>, transform_indices = @transform_3, window_bounds = array<i64: 32, 128>}, {transform_indices = @transform_4, window_bounds = array<i64: 4, 32, 128>}]} {
    %c0 = arith.constant 0 : index
    %c0_0 = arith.constant 0 : index
    %c0_1 = arith.constant 0 : index
    %0 = vector.load %arg1[%c0, %c0_0, %c0_1] : memref<4x32x7xf32, #tpu.memory_space<vmem>>, vector<4x32x7xf32>
    %1 = vector.extract_strided_slice %0 {offsets = [0, 31, 0], sizes = [4, 1, 7], strides = [1, 1, 1]} : vector<4x32x7xf32> to vector<4x1x7xf32>
    %2 = vector.extract_strided_slice %0 {offsets = [0, 0, 0], sizes = [4, 31, 7], strides = [1, 1, 1]} : vector<4x32x7xf32> to vector<4x31x7xf32>
    %3 = tpu.concatenate %1, %2 in 1 : vector<4x1x7xf32>, vector<4x31x7xf32> -> vector<4x32x7xf32>
    %4 = vector.extract_strided_slice %0 {offsets = [0, 1, 0], sizes = [4, 31, 7], strides = [1, 1, 1]} : vector<4x32x7xf32> to vector<4x31x7xf32>
    %5 = vector.extract_strided_slice %0 {offsets = [0, 0, 0], sizes = [4, 1, 7], strides = [1, 1, 1]} : vector<4x32x7xf32> to vector<4x1x7xf32>
    %6 = tpu.concatenate %4, %5 in 1 : vector<4x31x7xf32>, vector<4x1x7xf32> -> vector<4x32x7xf32>
    %7 = tpu.concatenate %3, %0, %6 in 2 : vector<4x32x7xf32>, vector<4x32x7xf32>, vector<4x32x7xf32> -> vector<4x32x21xf32>
    %8 = arith.truncf %7 : vector<4x32x21xf32> to vector<4x32x21xbf16>
    %c0_2 = arith.constant 0 : index
    %c0_3 = arith.constant 0 : index
    %c0_4 = arith.constant 0 : index
    %9 = vector.load %arg2[%c0_2, %c0_3, %c0_4] : memref<4x32x4xi32, #tpu.memory_space<vmem>>, vector<4x32x4xi32>
    %10 = tpu.iota {dimensions = array<i32: 2>} : vector<4x32x76xi32>
    %11 = vector.extract_strided_slice %9 {offsets = [0, 0, 0], sizes = [4, 32, 1], strides = [1, 1, 1]} : vector<4x32x4xi32> to vector<4x32x1xi32>
    %c0_i32 = arith.constant 0 : i32
    %12 = vector.broadcast %c0_i32 : i32 to vector<4x32x1xi32>
    %13 = arith.addi %11, %12 : vector<4x32x1xi32>
    %14 = vector.broadcast %13 : vector<4x32x1xi32> to vector<4x32x76xi32>
    %15 = arith.cmpi eq, %10, %14 : vector<4x32x76xi32>
    %16 = vector.extract_strided_slice %9 {offsets = [0, 0, 1], sizes = [4, 32, 1], strides = [1, 1, 1]} : vector<4x32x4xi32> to vector<4x32x1xi32>
    %c13_i32 = arith.constant 13 : i32
    %17 = vector.broadcast %c13_i32 : i32 to vector<4x32x1xi32>
    %18 = arith.addi %16, %17 : vector<4x32x1xi32>
    %19 = vector.broadcast %18 : vector<4x32x1xi32> to vector<4x32x76xi32>
    %20 = arith.cmpi eq, %10, %19 : vector<4x32x76xi32>
    %21 = arith.ori %15, %20 : vector<4x32x76xi1>
    %22 = vector.extract_strided_slice %9 {offsets = [0, 0, 2], sizes = [4, 32, 1], strides = [1, 1, 1]} : vector<4x32x4xi32> to vector<4x32x1xi32>
    %c45_i32 = arith.constant 45 : i32
    %23 = vector.broadcast %c45_i32 : i32 to vector<4x32x1xi32>
    %24 = arith.addi %22, %23 : vector<4x32x1xi32>
    %25 = vector.broadcast %24 : vector<4x32x1xi32> to vector<4x32x76xi32>
    %26 = arith.cmpi eq, %10, %25 : vector<4x32x76xi32>
    %27 = arith.ori %21, %26 : vector<4x32x76xi1>
    %28 = vector.extract_strided_slice %9 {offsets = [0, 0, 3], sizes = [4, 32, 1], strides = [1, 1, 1]} : vector<4x32x4xi32> to vector<4x32x1xi32>
    %c52_i32 = arith.constant 52 : i32
    %29 = vector.broadcast %c52_i32 : i32 to vector<4x32x1xi32>
    %30 = arith.addi %28, %29 : vector<4x32x1xi32>
    %31 = vector.broadcast %30 : vector<4x32x1xi32> to vector<4x32x76xi32>
    %32 = arith.cmpi eq, %10, %31 : vector<4x32x76xi32>
    %33 = arith.ori %27, %32 : vector<4x32x76xi1>
    %34 = arith.extui %33 : vector<4x32x76xi1> to vector<4x32x76xi32>
    %35 = arith.sitofp %34 : vector<4x32x76xi32> to vector<4x32x76xf32>
    %36 = arith.truncf %35 : vector<4x32x76xf32> to vector<4x32x76xbf16>
    %37 = tpu.concatenate %8, %36 in 2 : vector<4x32x21xbf16>, vector<4x32x76xbf16> -> vector<4x32x97xbf16>
    %38 = vector.shape_cast %37 : vector<4x32x97xbf16> to vector<128x97xbf16>
    %c0_5 = arith.constant 0 : index
    %c0_6 = arith.constant 0 : index
    %39 = vector.load %arg3[%c0_5, %c0_6] : memref<97x128xbf16, #tpu.memory_space<vmem>>, vector<97x128xbf16>
    %cst = arith.constant dense<0.000000e+00> : vector<128x128xf32>
    %40 = tpu.matmul %38, %39, %cst {dimension_numbers = #tpu.dot_dimension_numbers<[1], [0], [0], [1], [0, 0, 1, 1], [], []>} : vector<128x97xbf16>, vector<97x128xbf16>, vector<128x128xf32> -> vector<128x128xf32>
    %41 = vector.shape_cast %40 : vector<128x128xf32> to vector<4x32x128xf32>
    %c0_7 = arith.constant 0 : index
    %c0_8 = arith.constant 0 : index
    %42 = vector.load %arg4[%c0_7, %c0_8] : memref<32x128xf32, #tpu.memory_space<vmem>>, vector<32x128xf32>
    %43 = vector.shape_cast %42 : vector<32x128xf32> to vector<1x32x128xf32>
    %44 = vector.broadcast %43 : vector<1x32x128xf32> to vector<4x32x128xf32>
    %45 = arith.addf %41, %44 : vector<4x32x128xf32>
    %c0_9 = arith.constant 0 : index
    %c0_10 = arith.constant 0 : index
    %c0_11 = arith.constant 0 : index
    %46 = vector.load %arg5[%c0_9, %c0_10, %c0_11] : memref<4x32x128xf32, #tpu.memory_space<vmem>>, vector<4x32x128xf32>
    tpu.vector_store %arg5[%c0_9, %c0_10, %c0_11], %45 {strides = array<i32>} : memref<4x32x128xf32, #tpu.memory_space<vmem>>, vector<4x32x128xf32>,
    return
  }
  func.func @transform_0(%arg0: i32) -> (i32, i32, i32) {
    %c0_i32 = arith.constant 0 : i32
    %c0_i32_0 = arith.constant 0 : i32
    %c0_i32_1 = arith.constant 0 : i32
    return %arg0, %c0_i32, %c0_i32_0 : i32, i32, i32
  }
  func.func @transform_1(%arg0: i32) -> (i32, i32, i32) {
    %c0_i32 = arith.constant 0 : i32
    %c0_i32_0 = arith.constant 0 : i32
    %c0_i32_1 = arith.constant 0 : i32
    return %arg0, %c0_i32, %c0_i32_0 : i32, i32, i32
  }
  func.func @transform_2(%arg0: i32) -> (i32, i32) {
    %c0_i32 = arith.constant 0 : i32
    %c0_i32_0 = arith.constant 0 : i32
    %c0_i32_1 = arith.constant 0 : i32
    return %c0_i32, %c0_i32_0 : i32, i32
  }
  func.func @transform_3(%arg0: i32) -> (i32, i32) {
    %c0_i32 = arith.constant 0 : i32
    %c0_i32_0 = arith.constant 0 : i32
    %c0_i32_1 = arith.constant 0 : i32
    return %c0_i32, %c0_i32_0 : i32, i32
  }
  func.func @transform_4(%arg0: i32) -> (i32, i32, i32) {
    %c0_i32 = arith.constant 0 : i32
    %c0_i32_0 = arith.constant 0 : i32
    %c0_i32_1 = arith.constant 0 : i32
    return %arg0, %c0_i32, %c0_i32_0 : i32, i32, i32
  }
}

</mosaic_0001>

<llo_original>
// kernel: tpu_custom_call.1
$region0: #{tpu_custom_call.1}
  #allocation0 [shape = 'u32[]', space=smem, size = 0x4, offset = 0x4, fixed_abs, tag = 'smem constant byte address 0x4 - core index']
  #allocation1 [shape = 'u32[144,128]{1,0:T(1,128)}', space=vmem, size = 0x12000, scoped, tag = 'internal scratch']
  %s0 = inlined_call_operand.vmem [shape: f32[8,32,7], index: 0, kind: input, shape index: {}]
  %s1 = inlined_call_operand.vmem [shape: s32[8,32,4], index: 1, kind: input, shape index: {}]
  %s2 = inlined_call_operand.vmem [shape: bf16[97,128], index: 2, kind: input, shape index: {}]
  %s3 = inlined_call_operand.vmem [shape: f32[32,128], index: 3, kind: input, shape index: {}]
  %s4 = inlined_call_operand.hbm [shape: f32[8,32,128], index: 4, kind: output, shape index: {}]
  %s5 = sld [smem:[#allocation0]]
  $region49: #{tpu_custom_call.1} parent=0
    _
  %s7 = ssub.s32 1, %s5
  %s8 = scalar_select 0, %s7, %s5
  $region1: #{tpu_custom_call.1} parent=0
    #allocation2 [shape = 'u8[131072]{0}', space=vmem, size = 0x20000, scoped, tag = 'output window, operand 0']
    #allocation3 [shape = 's32[2]{0}', space=sflag, size = 0x8, scoped, tag = 'scoped memory for tpu_custom_call.1']
    %9 = vsyncpa [#allocation3], 0
    %s10 = scalar_lea.sflag [#allocation3], 1
    %11 = vsyncpa %s10, 0
    loop: start=0, step=1, limit=4
    $region2: #{tpu_custom_call.1} parent=1 // loop_pre_header
      _
    $region3: #{tpu_custom_call.1} parent=1 // loop_header
      %s13 = sphi 0, %s17
      %p14 = scmp.ge.s32.totalorder %s13, 4
      %s23 = sphi 0, %s25
      %s26 = sphi 0, %s23
      %s27 = sphi 0, %s26
      %s43 = sphi 0, %s27
      %s49 = sphi 0, %s51
      %s52 = sphi 0, %s49
      %s53 = sphi 0, %s52
      %s69 = sphi 0, %s53
      %s73 = sphi 0, %s73
      %s75 = sphi 0, %s73
      %s76 = sphi 0, %s75
      %s90 = sphi 0, %s76
      %s94 = sphi 0, %s94
      %s96 = sphi 0, %s94
      %s97 = sphi 0, %s96
      %s111 = sphi 0, %s97
      %s117 = sphi 0, %s119
      %s120 = sphi 0, %s117
      %s121 = sphi 0, %s120
      %s137 = sphi 0, %s121
    $region4: #{tpu_custom_call.1} parent=1 // loop_header_branch
      %16 = sbr.rel (%p14) target = $region8
    $region5: #{tpu_custom_call.1} parent=1 // loop_body
      %s18 = ssub.s32 %s13, 1
      %s19 = ssub.s32 %s13, 2
      %s20 = sadd.s32 %s13, 1
      %s21 = ssub.s32 %s13, %s20
      %p22 = scmp.eq.s32.totalorder %s21, 0
      %s24 = sadd.s32 %s23, 1
      %s25 = scalar_select %p22, %s23, %s24
      %p28 = pneg %p22
      %p29 = scmp.eq.s32.totalorder %s13, 1
      %p30 = por %p28, %p29
      %p31 = scmp.ne.s32.totalorder %s23, %s26
      %p32 = scmp.eq.s32.totalorder %s13, 0
      %p33 = por %p31, %p32
      %p34 = scmp.ne.s32.totalorder %s23, %s26
      %p35 = scmp.eq.s32.totalorder %s18, 1
      %p36 = por %p34, %p35
      %p37 = scmp.ne.s32.totalorder %s26, %s27
      %p38 = scmp.eq.s32.totalorder %s18, 0
      %p39 = por %p37, %p38
      %p40 = scmp.ne.s32.totalorder %s26, %s27
      %p41 = scmp.eq.s32.totalorder %s19, 1
      %p42 = por %p40, %p41
      %p44 = scmp.ne.s32.totalorder %s27, %s43
      %p45 = scmp.eq.s32.totalorder %s19, 0
      %p46 = por %p44, %p45
      %s47 = ssub.s32 %s13, %s20
      %p48 = scmp.eq.s32.totalorder %s47, 0
      %s50 = sadd.s32 %s49, 1
      %s51 = scalar_select %p48, %s49, %s50
      %p54 = pneg %p48
      %p55 = scmp.eq.s32.totalorder %s13, 1
      %p56 = por %p54, %p55
      %p57 = scmp.ne.s32.totalorder %s49, %s52
      %p58 = scmp.eq.s32.totalorder %s13, 0
      %p59 = por %p57, %p58
      %p60 = scmp.ne.s32.totalorder %s49, %s52
      %p61 = scmp.eq.s32.totalorder %s18, 1
      %p62 = por %p60, %p61
      %p63 = scmp.ne.s32.totalorder %s52, %s53
      %p64 = scmp.eq.s32.totalorder %s18, 0
      %p65 = por %p63, %p64
      %p66 = scmp.ne.s32.totalorder %s52, %s53
      %p67 = scmp.eq.s32.totalorder %s19, 1
      %p68 = por %p66, %p67
      %p70 = scmp.ne.s32.totalorder %s53, %s69
      %p71 = scmp.eq.s32.totalorder %s19, 0
      %p72 = por %p70, %p71
      %s74 = sadd.s32 %s73, 1
      %p77 = scmp.eq.s32.totalorder %s13, 1
      %p78 = scmp.ne.s32.totalorder %s73, %s75
      %p79 = scmp.eq.s32.totalorder %s13, 0
      %p80 = por %p78, %p79
      %p81 = scmp.ne.s32.totalorder %s73, %s75
      %p82 = scmp.eq.s32.totalorder %s18, 1
      %p83 = por %p81, %p82
      %p84 = scmp.ne.s32.totalorder %s75, %s76
      %p85 = scmp.eq.s32.totalorder %s18, 0
      %p86 = por %p84, %p85
      %p87 = scmp.ne.s32.totalorder %s75, %s76
      %p88 = scmp.eq.s32.totalorder %s19, 1
      %p89 = por %p87, %p88
      %p91 = scmp.ne.s32.totalorder %s76, %s90
      %p92 = scmp.eq.s32.totalorder %s19, 0
      %p93 = por %p91, %p92
      %s95 = sadd.s32 %s94, 1
      %p98 = scmp.eq.s32.totalorder %s13, 1
      %p99 = scmp.ne.s32.totalorder %s94, %s96
      %p100 = scmp.eq.s32.totalorder %s13, 0
      %p101 = por %p99, %p100
      %p102 = scmp.ne.s32.totalorder %s94, %s96
      %p103 = scmp.eq.s32.totalorder %s18, 1
      %p104 = por %p102, %p103
      %p105 = scmp.ne.s32.totalorder %s96, %s97
      %p106 = scmp.eq.s32.totalorder %s18, 0
      %p107 = por %p105, %p106
      %p108 = scmp.ne.s32.totalorder %s96, %s97
      %p109 = scmp.eq.s32.totalorder %s19, 1
      %p110 = por %p108, %p109
      %p112 = scmp.ne.s32.totalorder %s97, %s111
      %p113 = scmp.eq.s32.totalorder %s19, 0
      %p114 = por %p112, %p113
      %s115 = ssub.s32 %s13, %s20
      %p116 = scmp.eq.s32.totalorder %s115, 0
      %s118 = sadd.s32 %s117, 1
      %s119 = scalar_select %p116, %s117, %s118
      %p122 = pneg %p116
      %p123 = scmp.eq.s32.totalorder %s13, 1
      %p124 = por %p122, %p123
      %p125 = scmp.ne.s32.totalorder %s117, %s120
      %p126 = scmp.eq.s32.totalorder %s13, 0
      %p127 = por %p125, %p126
      %p128 = scmp.ne.s32.totalorder %s117, %s120
      %p129 = scmp.eq.s32.totalorder %s18, 1
      %p130 = por %p128, %p129
      %p131 = scmp.ne.s32.totalorder %s120, %s121
      %p132 = scmp.eq.s32.totalorder %s18, 0
      %p133 = por %p131, %p132
      %p134 = scmp.ne.s32.totalorder %s120, %s121
      %p135 = scmp.eq.s32.totalorder %s19, 1
      %p136 = por %p134, %p135
      %p138 = scmp.ne.s32.totalorder %s121, %s137
      %p139 = scmp.eq.s32.totalorder %s19, 0
      %p140 = por %p138, %p139
      %p141 = scmp.le.s32.totalorder 1, %s13
      %p142 = scmp.lt.s32.totalorder %s13, 3
      %p143 = pnand %p141, %p142
      %p144 = pneg %p143
      // Predicated region
      $region9: #{tpu_custom_call.1} parent=5 // pred_check
        _
      $region10: #{tpu_custom_call.1} parent=5 // pred_check_branch
        %146 = sbr.rel (%p143) target = $region12
      $region11: #{tpu_custom_call.1} parent=5 // pred_region
        %s147 = ssub.s32 %s13, 1
        // Predicated region
        $region13: #{tpu_custom_call.1} parent=11 // pred_check
          %p148 = pneg %p86
        $region14: #{tpu_custom_call.1} parent=11 // pred_check_branch
          %150 = sbr.rel (%p148) target = $region16
        $region15: #{tpu_custom_call.1} parent=11 // pred_region
          _
        $region16: #{tpu_custom_call.1} parent=11 // pred_fallthru
          _
        // Predicated region
        $region17: #{tpu_custom_call.1} parent=11 // pred_check
          %p151 = pneg %p107
        $region18: #{tpu_custom_call.1} parent=11 // pred_check_branch
          %153 = sbr.rel (%p151) target = $region20
        $region19: #{tpu_custom_call.1} parent=11 // pred_region
          _
        $region20: #{tpu_custom_call.1} parent=11 // pred_fallthru
          _
      $region12: #{tpu_custom_call.1} parent=5 // pred_fallthru
        _
      %p154 = scmp.lt.s32.totalorder %s13, 2
      // Predicated region
      $region21: #{tpu_custom_call.1} parent=5 // pred_check
        %p155 = pneg %p154
      $region22: #{tpu_custom_call.1} parent=5 // pred_check_branch
        %157 = sbr.rel (%p155) target = $region24
      $region23: #{tpu_custom_call.1} parent=5 // pred_region
        // Predicated region
        $region25: #{tpu_custom_call.1} parent=23 // pred_check
          %p158 = pneg %p33
        $region26: #{tpu_custom_call.1} parent=23 // pred_check_branch
          %160 = sbr.rel (%p158) target = $region28
        $region27: #{tpu_custom_call.1} parent=23 // pred_region
          %s161 = smul.u32 4, %s13
          %p162 = scmp.lt.s32.totalorder %s161, 7
          %s163 = scalar_select %p162, %s161, 7
          %s164 = smul.addr %s163, 4
          %s165 = smul.addr %s164, 8
          %s166 = scalar_lea.vmem %s0, %s165
          %s167 = smul.u32 4, %s13
        $region28: #{tpu_custom_call.1} parent=23 // pred_fallthru
          _
        // Predicated region
        $region29: #{tpu_custom_call.1} parent=23 // pred_check
          %p168 = pneg %p59
        $region30: #{tpu_custom_call.1} parent=23 // pred_check_branch
          %170 = sbr.rel (%p168) target = $region32
        $region31: #{tpu_custom_call.1} parent=23 // pred_region
          %s171 = smul.u32 4, %s13
          %p172 = scmp.lt.s32.totalorder %s171, 7
          %s173 = scalar_select %p172, %s171, 7
          %s174 = smul.addr %s173, 4
          %s175 = smul.addr %s174, 8
          %s176 = scalar_lea.vmem %s1, %s175
          %s177 = smul.u32 4, %s13
        $region32: #{tpu_custom_call.1} parent=23 // pred_fallthru
          _
      $region24: #{tpu_custom_call.1} parent=5 // pred_fallthru
        _
      %p178 = scmp.le.s32.totalorder 1, %s13
      %p179 = scmp.lt.s32.totalorder %s13, 3
      %p180 = pnand %p178, %p179
      %p181 = pneg %p180
      // Predicated region
      $region33: #{tpu_custom_call.1} parent=5 // pred_check
        _
      $region34: #{tpu_custom_call.1} parent=5 // pred_check_branch
        %183 = sbr.rel (%p180) target = $region36
      $region35: #{tpu_custom_call.1} parent=5 // pred_region
        %s184 = ssub.s32 %s13, 1
        %s185 = smul.u32 4, %s18
        %p186 = scmp.lt.s32.totalorder %s185, 7
        %s187 = scalar_select %p186, %s185, 7
        %s188 = smul.addr %s187, 4
        %s189 = smul.addr %s188, 8
        %s190 = scalar_lea.vmem %s0, %s189
        %p191 = pneg %p39
        %p192 = pneg %p36
        %s193 = smul.u32 4, %s18
        %p194 = scmp.lt.s32.totalorder %s193, 7
        %s195 = scalar_select %p194, %s193, 7
        %s196 = smul.addr %s195, 4
        %s197 = smul.addr %s196, 8
        %s198 = scalar_lea.vmem %s1, %s197
        %p199 = pneg %p65
        %p200 = pneg %p62
        %p201 = pneg %p86
        %p202 = pneg %p83
        %p203 = pneg %p107
        %p204 = pneg %p104
        %p205 = pneg %p133
        %p206 = pneg %p130
        %s207 = sand.u32 %s120, 1
        %s208 = scalar_lea.sflag [#allocation3], %s207
        %s209 = sand.u32 %s120, 1
        %s210 = smul.addr %s209, 128
        %s211 = scalar_lea.vmem [#allocation2], %s210
        %s212 = smul.u32 4, %s18
        %p213 = scmp.lt.s32.totalorder %s212, 7
        %s214 = scalar_select %p213, %s212, 7
        %s215 = smul.addr %s214, 4
        %s216 = smul.addr %s215, 8
        %s217 = scalar_lea.vmem %s0, %s216
        %s218 = smul.u32 4, %s18
        %s219 = smul.u32 4, %s18
        %p220 = scmp.lt.s32.totalorder %s219, 7
        %s221 = scalar_select %p220, %s219, 7
        %s222 = smul.addr %s221, 4
        %s223 = smul.addr %s222, 8
        %s224 = scalar_lea.vmem %s1, %s223
        %s225 = smul.u32 4, %s18
        %s226 = smul.u32 4, %s18
        %v228 = vld [vmem:[%s217] sm:$0xff]
        %v229 = vld [vmem:[%s217 + $0x8] sm:$0xff]
        %v230 = vld [vmem:[%s217 + $0x10] sm:$0xff]
        %v231 = vld [vmem:[%s217 + $0x18] sm:$0xff]
        %v232 = vld [vmem:[%s217 + $0x20] sm:$0xff]
        %v233 = vld [vmem:[%s217 + $0x28] sm:$0xff]
        %v234 = vld [vmem:[%s217 + $0x30] sm:$0xff]
        %v235 = vld [vmem:[%s217 + $0x38] sm:$0xff]
        %v236 = vld [vmem:[%s217 + $0x40] sm:$0xff]
        %v237 = vld [vmem:[%s217 + $0x48] sm:$0xff]
        %v238 = vld [vmem:[%s217 + $0x50] sm:$0xff]
        %v239 = vld [vmem:[%s217 + $0x58] sm:$0xff]
        %v240 = vld [vmem:[%s217 + $0x60] sm:$0xff]
        %v241 = vld [vmem:[%s217 + $0x68] sm:$0xff]
        %v242 = vld [vmem:[%s217 + $0x70] sm:$0xff]
        %v243 = vld [vmem:[%s217 + $0x78] sm:$0xff]
        %v248 = vrot.slane %v231, 7
        %v249 = vrot.slane %v235, 7
        %v250 = vrot.slane %v239, 7
        %v251 = vrot.slane %v243, 7
        %vm268 = vcmask 1040384
        %v269 = vrot.slane %v228, 7
        %v270 = vrot.slane %v229, 7
        %v271 = vsel %vm268, %v269, %v270
        %v272 = vrot.slane %v230, 7
        %v273 = vsel %vm268, %v270, %v272
        %v274 = vsel %vm268, %v272, %v248
        %v275 = vrot.slane %v232, 7
        %v276 = vrot.slane %v233, 7
        %v277 = vsel %vm268, %v275, %v276
        %v278 = vrot.slane %v234, 7
        %v279 = vsel %vm268, %v276, %v278
        %v280 = vsel %vm268, %v278, %v249
        %v281 = vrot.slane %v236, 7
        %v282 = vrot.slane %v237, 7
        %v283 = vsel %vm268, %v281, %v282
        %v284 = vrot.slane %v238, 7
        %v285 = vsel %vm268, %v282, %v284
        %v286 = vsel %vm268, %v284, %v250
        %v287 = vrot.slane %v240, 7
        %v288 = vrot.slane %v241, 7
        %v289 = vsel %vm268, %v287, %v288
        %v290 = vrot.slane %v242, 7
        %v291 = vsel %vm268, %v288, %v290
        %v292 = vsel %vm268, %v290, %v251
        %v309 = vsel %vm268, %v248, %v269
        %v310 = vsel %vm268, %v249, %v275
        %v311 = vsel %vm268, %v250, %v281
        %v312 = vsel %vm268, %v251, %v287
        %vm313 = vcmask 1046528
        %v314 = vrot.slane %v228, 1
        %v315 = vrot.slane %v229, 1
        %v316 = vsel %vm313, %v314, %v315
        %v317 = vrot.slane %v230, 1
        %v318 = vsel %vm313, %v315, %v317
        %v319 = vrot.slane %v231, 1
        %v320 = vsel %vm313, %v317, %v319
        %v321 = vrot.slane %v232, 1
        %v322 = vrot.slane %v233, 1
        %v323 = vsel %vm313, %v321, %v322
        %v324 = vrot.slane %v234, 1
        %v325 = vsel %vm313, %v322, %v324
        %v326 = vrot.slane %v235, 1
        %v327 = vsel %vm313, %v324, %v326
        %v328 = vrot.slane %v236, 1
        %v329 = vrot.slane %v237, 1
        %v330 = vsel %vm313, %v328, %v329
        %v331 = vrot.slane %v238, 1
        %v332 = vsel %vm313, %v329, %v331
        %v333 = vrot.slane %v239, 1
        %v334 = vsel %vm313, %v331, %v333
        %v335 = vrot.slane %v240, 1
        %v336 = vrot.slane %v241, 1
        %v337 = vsel %vm313, %v335, %v336
        %v338 = vrot.slane %v242, 1
        %v339 = vsel %vm313, %v336, %v338
        %v340 = vrot.slane %v243, 1
        %v341 = vsel %vm313, %v338, %v340
        %v350 = vsel %vm313, %v319, %v314
        %v351 = vsel %vm313, %v326, %v321
        %v352 = vsel %vm313, %v333, %v328
        %v353 = vsel %vm313, %v340, %v335
        %354 = vrot.lane.b32.xlu0 %v228, 7
        %v355 = vpop.permute.xlu0 %354
        %356 = vrot.lane.b32.xlu0 %v229, 7
        %v357 = vpop.permute.xlu0 %356
        %358 = vrot.lane.b32.xlu0 %v230, 7
        %v359 = vpop.permute.xlu0 %358
        %360 = vrot.lane.b32.xlu0 %v231, 7
        %v361 = vpop.permute.xlu0 %360
        %362 = vrot.lane.b32.xlu0 %v232, 7
        %v363 = vpop.permute.xlu0 %362
        %364 = vrot.lane.b32.xlu0 %v233, 7
        %v365 = vpop.permute.xlu0 %364
        %366 = vrot.lane.b32.xlu0 %v234, 7
        %v367 = vpop.permute.xlu0 %366
        %368 = vrot.lane.b32.xlu0 %v235, 7
        %v369 = vpop.permute.xlu0 %368
        %370 = vrot.lane.b32.xlu0 %v236, 7
        %v371 = vpop.permute.xlu0 %370
        %372 = vrot.lane.b32.xlu0 %v237, 7
        %v373 = vpop.permute.xlu0 %372
        %374 = vrot.lane.b32.xlu0 %v238, 7
        %v375 = vpop.permute.xlu0 %374
        %376 = vrot.lane.b32.xlu0 %v239, 7
        %v377 = vpop.permute.xlu0 %376
        %378 = vrot.lane.b32.xlu0 %v240, 7
        %v379 = vpop.permute.xlu0 %378
        %380 = vrot.lane.b32.xlu0 %v241, 7
        %v381 = vpop.permute.xlu0 %380
        %382 = vrot.lane.b32.xlu0 %v242, 7
        %v383 = vpop.permute.xlu0 %382
        %384 = vrot.lane.b32.xlu0 %v243, 7
        %v385 = vpop.permute.xlu0 %384
        %406 = vrot.lane.b32.xlu0 %v316, 14
        %v407 = vpop.permute.xlu0 %406
        %408 = vrot.lane.b32.xlu0 %v318, 14
        %v409 = vpop.permute.xlu0 %408
        %410 = vrot.lane.b32.xlu0 %v320, 14
        %v411 = vpop.permute.xlu0 %410
        %412 = vrot.lane.b32.xlu0 %v350, 14
        %v413 = vpop.permute.xlu0 %412
        %414 = vrot.lane.b32.xlu0 %v323, 14
        %v415 = vpop.permute.xlu0 %414
        %416 = vrot.lane.b32.xlu0 %v325, 14
        %v417 = vpop.permute.xlu0 %416
        %418 = vrot.lane.b32.xlu0 %v327, 14
        %v419 = vpop.permute.xlu0 %418
        %420 = vrot.lane.b32.xlu0 %v351, 14
        %v421 = vpop.permute.xlu0 %420
        %422 = vrot.lane.b32.xlu0 %v330, 14
        %v423 = vpop.permute.xlu0 %422
        %424 = vrot.lane.b32.xlu0 %v332, 14
        %v425 = vpop.permute.xlu0 %424
        %426 = vrot.lane.b32.xlu0 %v334, 14
        %v427 = vpop.permute.xlu0 %426
        %428 = vrot.lane.b32.xlu0 %v352, 14
        %v429 = vpop.permute.xlu0 %428
        %430 = vrot.lane.b32.xlu0 %v337, 14
        %v431 = vpop.permute.xlu0 %430
        %432 = vrot.lane.b32.xlu0 %v339, 14
        %v433 = vpop.permute.xlu0 %432
        %434 = vrot.lane.b32.xlu0 %v341, 14
        %v435 = vpop.permute.xlu0 %434
        %436 = vrot.lane.b32.xlu0 %v353, 14
        %v437 = vpop.permute.xlu0 %436
        %vm454 = vcmask 56320
        %v455 = vsel %vm454, %v309, %v355
        %v456 = vsel %vm454, %v271, %v357
        %v457 = vsel %vm454, %v273, %v359
        %v458 = vsel %vm454, %v274, %v361
        %v459 = vsel %vm454, %v310, %v363
        %v460 = vsel %vm454, %v277, %v365
        %v461 = vsel %vm454, %v279, %v367
        %v462 = vsel %vm454, %v280, %v369
        %v463 = vsel %vm454, %v311, %v371
        %v464 = vsel %vm454, %v283, %v373
        %v465 = vsel %vm454, %v285, %v375
        %v466 = vsel %vm454, %v286, %v377
        %v467 = vsel %vm454, %v312, %v379
        %v468 = vsel %vm454, %v289, %v381
        %v469 = vsel %vm454, %v291, %v383
        %v470 = vsel %vm454, %v292, %v385
        %vm471 = vcmask 113664
        %v472 = vsel %vm471, %v455, %v407
        %v473 = vsel %vm471, %v456, %v409
        %v474 = vsel %vm471, %v457, %v411
        %v475 = vsel %vm471, %v458, %v413
        %v476 = vsel %vm471, %v459, %v415
        %v477 = vsel %vm471, %v460, %v417
        %v478 = vsel %vm471, %v461, %v419
        %v479 = vsel %vm471, %v462, %v421
        %v480 = vsel %vm471, %v463, %v423
        %v481 = vsel %vm471, %v464, %v425
        %v482 = vsel %vm471, %v465, %v427
        %v483 = vsel %vm471, %v466, %v429
        %v484 = vsel %vm471, %v467, %v431
        %v485 = vsel %vm471, %v468, %v433
        %v486 = vsel %vm471, %v469, %v435
        %v487 = vsel %vm471, %v470, %v437
        %v488 = vpack.c.bf16 %v473, %v472
        %v489 = vpack.c.bf16 %v475, %v474
        %v490 = vpack.c.bf16 %v477, %v476
        %v491 = vpack.c.bf16 %v479, %v478
        %v492 = vpack.c.bf16 %v481, %v480
        %v493 = vpack.c.bf16 %v483, %v482
        %v494 = vpack.c.bf16 %v485, %v484
        %v495 = vpack.c.bf16 %v487, %v486
        %v496 = vld [vmem:[%s224] sm:$0xff]
        %v497 = vld [vmem:[%s224 + $0x8] sm:$0xff]
        %v498 = vld [vmem:[%s224 + $0x10] sm:$0xff]
        %v499 = vld [vmem:[%s224 + $0x18] sm:$0xff]
        %v500 = vld [vmem:[%s224 + $0x20] sm:$0xff]
        %v501 = vld [vmem:[%s224 + $0x28] sm:$0xff]
        %v502 = vld [vmem:[%s224 + $0x30] sm:$0xff]
        %v503 = vld [vmem:[%s224 + $0x38] sm:$0xff]
        %v504 = vld [vmem:[%s224 + $0x40] sm:$0xff]
        %v505 = vld [vmem:[%s224 + $0x48] sm:$0xff]
        %v506 = vld [vmem:[%s224 + $0x50] sm:$0xff]
        %v507 = vld [vmem:[%s224 + $0x58] sm:$0xff]
        %v508 = vld [vmem:[%s224 + $0x60] sm:$0xff]
        %v509 = vld [vmem:[%s224 + $0x68] sm:$0xff]
        %v510 = vld [vmem:[%s224 + $0x70] sm:$0xff]
        %v511 = vld [vmem:[%s224 + $0x78] sm:$0xff]
        %v512 = vlaneseq
        %v513 = vand.u32 %v512, 127
        %514 = vset.pattern.permute.xlu0 0
        %515 = vperm.xlu0 %514, %v496
        %v516 = vpop.permute.xlu0 %515
        %517 = vset.pattern.permute.xlu0 0
        %518 = vperm.xlu0 %517, %v497
        %v519 = vpop.permute.xlu0 %518
        %520 = vset.pattern.permute.xlu0 0
        %521 = vperm.xlu0 %520, %v498
        %v522 = vpop.permute.xlu0 %521
        %523 = vset.pattern.permute.xlu0 0
        %524 = vperm.xlu0 %523, %v499
        %v525 = vpop.permute.xlu0 %524
        %526 = vset.pattern.permute.xlu0 0
        %527 = vperm.xlu0 %526, %v500
        %v528 = vpop.permute.xlu0 %527
        %529 = vset.pattern.permute.xlu0 0
        %530 = vperm.xlu0 %529, %v501
        %v531 = vpop.permute.xlu0 %530
        %532 = vset.pattern.permute.xlu0 0
        %533 = vperm.xlu0 %532, %v502
        %v534 = vpop.permute.xlu0 %533
        %535 = vset.pattern.permute.xlu0 0
        %536 = vperm.xlu0 %535, %v503
        %v537 = vpop.permute.xlu0 %536
        %538 = vset.pattern.permute.xlu0 0
        %539 = vperm.xlu0 %538, %v504
        %v540 = vpop.permute.xlu0 %539
        %541 = vset.pattern.permute.xlu0 0
        %542 = vperm.xlu0 %541, %v505
        %v543 = vpop.permute.xlu0 %542
        %544 = vset.pattern.permute.xlu0 0
        %545 = vperm.xlu0 %544, %v506
        %v546 = vpop.permute.xlu0 %545
        %547 = vset.pattern.permute.xlu0 0
        %548 = vperm.xlu0 %547, %v507
        %v549 = vpop.permute.xlu0 %548
        %550 = vset.pattern.permute.xlu0 0
        %551 = vperm.xlu0 %550, %v508
        %v552 = vpop.permute.xlu0 %551
        %553 = vset.pattern.permute.xlu0 0
        %554 = vperm.xlu0 %553, %v509
        %v555 = vpop.permute.xlu0 %554
        %556 = vset.pattern.permute.xlu0 0
        %557 = vperm.xlu0 %556, %v510
        %v558 = vpop.permute.xlu0 %557
        %559 = vset.pattern.permute.xlu0 0
        %560 = vperm.xlu0 %559, %v511
        %v561 = vpop.permute.xlu0 %560
        %vm562 = vcmp.eq.s32.totalorder %v513, %v516
        %vm563 = vcmp.eq.s32.totalorder %v513, %v519
        %vm564 = vcmp.eq.s32.totalorder %v513, %v522
        %vm565 = vcmp.eq.s32.totalorder %v513, %v525
        %vm566 = vcmp.eq.s32.totalorder %v513, %v528
        %vm567 = vcmp.eq.s32.totalorder %v513, %v531
        %vm568 = vcmp.eq.s32.totalorder %v513, %v534
        %vm569 = vcmp.eq.s32.totalorder %v513, %v537
        %vm570 = vcmp.eq.s32.totalorder %v513, %v540
        %vm571 = vcmp.eq.s32.totalorder %v513, %v543
        %vm572 = vcmp.eq.s32.totalorder %v513, %v546
        %vm573 = vcmp.eq.s32.totalorder %v513, %v549
        %vm574 = vcmp.eq.s32.totalorder %v513, %v552
        %vm575 = vcmp.eq.s32.totalorder %v513, %v555
        %vm576 = vcmp.eq.s32.totalorder %v513, %v558
        %vm577 = vcmp.eq.s32.totalorder %v513, %v561
        %v578 = vadd.s32 %v496, 13
        %v579 = vadd.s32 %v497, 13
        %v580 = vadd.s32 %v498, 13
        %v581 = vadd.s32 %v499, 13
        %v582 = vadd.s32 %v500, 13
        %v583 = vadd.s32 %v501, 13
        %v584 = vadd.s32 %v502, 13
        %v585 = vadd.s32 %v503, 13
        %v586 = vadd.s32 %v504, 13
        %v587 = vadd.s32 %v505, 13
        %v588 = vadd.s32 %v506, 13
        %v589 = vadd.s32 %v507, 13
        %v590 = vadd.s32 %v508, 13
        %v591 = vadd.s32 %v509, 13
        %v592 = vadd.s32 %v510, 13
        %v593 = vadd.s32 %v511, 13
        %594 = vset.pattern.permute.xlu0 1
        %595 = vperm.xlu0 %594, %v578
        %v596 = vpop.permute.xlu0 %595
        %597 = vset.pattern.permute.xlu0 1
        %598 = vperm.xlu0 %597, %v579
        %v599 = vpop.permute.xlu0 %598
        %600 = vset.pattern.permute.xlu0 1
        %601 = vperm.xlu0 %600, %v580
        %v602 = vpop.permute.xlu0 %601
        %603 = vset.pattern.permute.xlu0 1
        %604 = vperm.xlu0 %603, %v581
        %v605 = vpop.permute.xlu0 %604
        %606 = vset.pattern.permute.xlu0 1
        %607 = vperm.xlu0 %606, %v582
        %v608 = vpop.permute.xlu0 %607
        %609 = vset.pattern.permute.xlu0 1
        %610 = vperm.xlu0 %609, %v583
        %v611 = vpop.permute.xlu0 %610
        %612 = vset.pattern.permute.xlu0 1
        %613 = vperm.xlu0 %612, %v584
        %v614 = vpop.permute.xlu0 %613
        %615 = vset.pattern.permute.xlu0 1
        %616 = vperm.xlu0 %615, %v585
        %v617 = vpop.permute.xlu0 %616
        %618 = vset.pattern.permute.xlu0 1
        %619 = vperm.xlu0 %618, %v586
        %v620 = vpop.permute.xlu0 %619
        %621 = vset.pattern.permute.xlu0 1
        %622 = vperm.xlu0 %621, %v587
        %v623 = vpop.permute.xlu0 %622
        %624 = vset.pattern.permute.xlu0 1
        %625 = vperm.xlu0 %624, %v588
        %v626 = vpop.permute.xlu0 %625
        %627 = vset.pattern.permute.xlu0 1
        %628 = vperm.xlu0 %627, %v589
        %v629 = vpop.permute.xlu0 %628
        %630 = vset.pattern.permute.xlu0 1
        %631 = vperm.xlu0 %630, %v590
        %v632 = vpop.permute.xlu0 %631
        %633 = vset.pattern.permute.xlu0 1
        %634 = vperm.xlu0 %633, %v591
        %v635 = vpop.permute.xlu0 %634
        %636 = vset.pattern.permute.xlu0 1
        %637 = vperm.xlu0 %636, %v592
        %v638 = vpop.permute.xlu0 %637
        %639 = vset.pattern.permute.xlu0 1
        %640 = vperm.xlu0 %639, %v593
        %v641 = vpop.permute.xlu0 %640
        %vm642 = vcmp.eq.s32.totalorder %v513, %v596
        %vm643 = vcmp.eq.s32.totalorder %v513, %v599
        %vm644 = vcmp.eq.s32.totalorder %v513, %v602
        %vm645 = vcmp.eq.s32.totalorder %v513, %v605
        %vm646 = vcmp.eq.s32.totalorder %v513, %v608
        %vm647 = vcmp.eq.s32.totalorder %v513, %v611
        %vm648 = vcmp.eq.s32.totalorder %v513, %v614
        %vm649 = vcmp.eq.s32.totalorder %v513, %v617
        %vm650 = vcmp.eq.s32.totalorder %v513, %v620
        %vm651 = vcmp.eq.s32.totalorder %v513, %v623
        %vm652 = vcmp.eq.s32.totalorder %v513, %v626
        %vm653 = vcmp.eq.s32.totalorder %v513, %v629
        %vm654 = vcmp.eq.s32.totalorder %v513, %v632
        %vm655 = vcmp.eq.s32.totalorder %v513, %v635
        %vm656 = vcmp.eq.s32.totalorder %v513, %v638
        %vm657 = vcmp.eq.s32.totalorder %v513, %v641
        %vm658 = vmor %vm562, %vm642
        %vm659 = vmor %vm563, %vm643
        %vm660 = vmor %vm564, %vm644
        %vm661 = vmor %vm565, %vm645
        %vm662 = vmor %vm566, %vm646
        %vm663 = vmor %vm567, %vm647
        %vm664 = vmor %vm568, %vm648
        %vm665 = vmor %vm569, %vm649
        %vm666 = vmor %vm570, %vm650
        %vm667 = vmor %vm571, %vm651
        %vm668 = vmor %vm572, %vm652
        %vm669 = vmor %vm573, %vm653
        %vm670 = vmor %vm574, %vm654
        %vm671 = vmor %vm575, %vm655
        %vm672 = vmor %vm576, %vm656
        %vm673 = vmor %vm577, %vm657
        %v674 = vadd.s32 %v496, 45
        %v675 = vadd.s32 %v497, 45
        %v676 = vadd.s32 %v498, 45
        %v677 = vadd.s32 %v499, 45
        %v678 = vadd.s32 %v500, 45
        %v679 = vadd.s32 %v501, 45
        %v680 = vadd.s32 %v502, 45
        %v681 = vadd.s32 %v503, 45
        %v682 = vadd.s32 %v504, 45
        %v683 = vadd.s32 %v505, 45
        %v684 = vadd.s32 %v506, 45
        %v685 = vadd.s32 %v507, 45
        %v686 = vadd.s32 %v508, 45
        %v687 = vadd.s32 %v509, 45
        %v688 = vadd.s32 %v510, 45
        %v689 = vadd.s32 %v511, 45
        %690 = vset.pattern.permute.xlu0 2
        %691 = vperm.xlu0 %690, %v674
        %v692 = vpop.permute.xlu0 %691
        %693 = vset.pattern.permute.xlu0 2
        %694 = vperm.xlu0 %693, %v675
        %v695 = vpop.permute.xlu0 %694
        %696 = vset.pattern.permute.xlu0 2
        %697 = vperm.xlu0 %696, %v676
        %v698 = vpop.permute.xlu0 %697
        %699 = vset.pattern.permute.xlu0 2
        %700 = vperm.xlu0 %699, %v677
        %v701 = vpop.permute.xlu0 %700
        %702 = vset.pattern.permute.xlu0 2
        %703 = vperm.xlu0 %702, %v678
        %v704 = vpop.permute.xlu0 %703
        %705 = vset.pattern.permute.xlu0 2
        %706 = vperm.xlu0 %705, %v679
        %v707 = vpop.permute.xlu0 %706
        %708 = vset.pattern.permute.xlu0 2
        %709 = vperm.xlu0 %708, %v680
        %v710 = vpop.permute.xlu0 %709
        %711 = vset.pattern.permute.xlu0 2
        %712 = vperm.xlu0 %711, %v681
        %v713 = vpop.permute.xlu0 %712
        %714 = vset.pattern.permute.xlu0 2
        %715 = vperm.xlu0 %714, %v682
        %v716 = vpop.permute.xlu0 %715
        %717 = vset.pattern.permute.xlu0 2
        %718 = vperm.xlu0 %717, %v683
        %v719 = vpop.permute.xlu0 %718
        %720 = vset.pattern.permute.xlu0 2
        %721 = vperm.xlu0 %720, %v684
        %v722 = vpop.permute.xlu0 %721
        %723 = vset.pattern.permute.xlu0 2
        %724 = vperm.xlu0 %723, %v685
        %v725 = vpop.permute.xlu0 %724
        %726 = vset.pattern.permute.xlu0 2
        %727 = vperm.xlu0 %726, %v686
        %v728 = vpop.permute.xlu0 %727
        %729 = vset.pattern.permute.xlu0 2
        %730 = vperm.xlu0 %729, %v687
        %v731 = vpop.permute.xlu0 %730
        %732 = vset.pattern.permute.xlu0 2
        %733 = vperm.xlu0 %732, %v688
        %v734 = vpop.permute.xlu0 %733
        %735 = vset.pattern.permute.xlu0 2
        %736 = vperm.xlu0 %735, %v689
        %v737 = vpop.permute.xlu0 %736
        %vm738 = vcmp.eq.s32.totalorder %v513, %v692
        %vm739 = vcmp.eq.s32.totalorder %v513, %v695
        %vm740 = vcmp.eq.s32.totalorder %v513, %v698
        %vm741 = vcmp.eq.s32.totalorder %v513, %v701
        %vm742 = vcmp.eq.s32.totalorder %v513, %v704
        %vm743 = vcmp.eq.s32.totalorder %v513, %v707
        %vm744 = vcmp.eq.s32.totalorder %v513, %v710
        %vm745 = vcmp.eq.s32.totalorder %v513, %v713
        %vm746 = vcmp.eq.s32.totalorder %v513, %v716
        %vm747 = vcmp.eq.s32.totalorder %v513, %v719
        %vm748 = vcmp.eq.s32.totalorder %v513, %v722
        %vm749 = vcmp.eq.s32.totalorder %v513, %v725
        %vm750 = vcmp.eq.s32.totalorder %v513, %v728
        %vm751 = vcmp.eq.s32.totalorder %v513, %v731
        %vm752 = vcmp.eq.s32.totalorder %v513, %v734
        %vm753 = vcmp.eq.s32.totalorder %v513, %v737
        %vm754 = vmor %vm658, %vm738
        %vm755 = vmor %vm659, %vm739
        %vm756 = vmor %vm660, %vm740
        %vm757 = vmor %vm661, %vm741
        %vm758 = vmor %vm662, %vm742
        %vm759 = vmor %vm663, %vm743
        %vm760 = vmor %vm664, %vm744
        %vm761 = vmor %vm665, %vm745
        %vm762 = vmor %vm666, %vm746
        %vm763 = vmor %vm667, %vm747
        %vm764 = vmor %vm668, %vm748
        %vm765 = vmor %vm669, %vm749
        %vm766 = vmor %vm670, %vm750
        %vm767 = vmor %vm671, %vm751
        %vm768 = vmor %vm672, %vm752
        %vm769 = vmor %vm673, %vm753
        %v770 = vadd.s32 %v496, 52
        %v771 = vadd.s32 %v497, 52
        %v772 = vadd.s32 %v498, 52
        %v773 = vadd.s32 %v499, 52
        %v774 = vadd.s32 %v500, 52
        %v775 = vadd.s32 %v501, 52
        %v776 = vadd.s32 %v502, 52
        %v777 = vadd.s32 %v503, 52
        %v778 = vadd.s32 %v504, 52
        %v779 = vadd.s32 %v505, 52
        %v780 = vadd.s32 %v506, 52
        %v781 = vadd.s32 %v507, 52
        %v782 = vadd.s32 %v508, 52
        %v783 = vadd.s32 %v509, 52
        %v784 = vadd.s32 %v510, 52
        %v785 = vadd.s32 %v511, 52
        %786 = vset.pattern.permute.xlu0 3
        %787 = vperm.xlu0 %786, %v770
        %v788 = vpop.permute.xlu0 %787
        %789 = vset.pattern.permute.xlu0 3
        %790 = vperm.xlu0 %789, %v771
        %v791 = vpop.permute.xlu0 %790
        %792 = vset.pattern.permute.xlu0 3
        %793 = vperm.xlu0 %792, %v772
        %v794 = vpop.permute.xlu0 %793
        %795 = vset.pattern.permute.xlu0 3
        %796 = vperm.xlu0 %795, %v773
        %v797 = vpop.permute.xlu0 %796
        %798 = vset.pattern.permute.xlu0 3
        %799 = vperm.xlu0 %798, %v774
        %v800 = vpop.permute.xlu0 %799
        %801 = vset.pattern.permute.xlu0 3
        %802 = vperm.xlu0 %801, %v775
        %v803 = vpop.permute.xlu0 %802
        %804 = vset.pattern.permute.xlu0 3
        %805 = vperm.xlu0 %804, %v776
        %v806 = vpop.permute.xlu0 %805
        %807 = vset.pattern.permute.xlu0 3
        %808 = vperm.xlu0 %807, %v777
        %v809 = vpop.permute.xlu0 %808
        %810 = vset.pattern.permute.xlu0 3
        %811 = vperm.xlu0 %810, %v778
        %v812 = vpop.permute.xlu0 %811
        %813 = vset.pattern.permute.xlu0 3
        %814 = vperm.xlu0 %813, %v779
        %v815 = vpop.permute.xlu0 %814
        %816 = vset.pattern.permute.xlu0 3
        %817 = vperm.xlu0 %816, %v780
        %v818 = vpop.permute.xlu0 %817
        %819 = vset.pattern.permute.xlu0 3
        %820 = vperm.xlu0 %819, %v781
        %v821 = vpop.permute.xlu0 %820
        %822 = vset.pattern.permute.xlu0 3
        %823 = vperm.xlu0 %822, %v782
        %v824 = vpop.permute.xlu0 %823
        %825 = vset.pattern.permute.xlu0 3
        %826 = vperm.xlu0 %825, %v783
        %v827 = vpop.permute.xlu0 %826
        %828 = vset.pattern.permute.xlu0 3
        %829 = vperm.xlu0 %828, %v784
        %v830 = vpop.permute.xlu0 %829
        %831 = vset.pattern.permute.xlu0 3
        %832 = vperm.xlu0 %831, %v785
        %v833 = vpop.permute.xlu0 %832
        %vm834 = vcmp.eq.s32.totalorder %v513, %v788
        %vm835 = vcmp.eq.s32.totalorder %v513, %v791
        %vm836 = vcmp.eq.s32.totalorder %v513, %v794
        %vm837 = vcmp.eq.s32.totalorder %v513, %v797
        %vm838 = vcmp.eq.s32.totalorder %v513, %v800
        %vm839 = vcmp.eq.s32.totalorder %v513, %v803
        %vm840 = vcmp.eq.s32.totalorder %v513, %v806
        %vm841 = vcmp.eq.s32.totalorder %v513, %v809
        %vm842 = vcmp.eq.s32.totalorder %v513, %v812
        %vm843 = vcmp.eq.s32.totalorder %v513, %v815
        %vm844 = vcmp.eq.s32.totalorder %v513, %v818
        %vm845 = vcmp.eq.s32.totalorder %v513, %v821
        %vm846 = vcmp.eq.s32.totalorder %v513, %v824
        %vm847 = vcmp.eq.s32.totalorder %v513, %v827
        %vm848 = vcmp.eq.s32.totalorder %v513, %v830
        %vm849 = vcmp.eq.s32.totalorder %v513, %v833
        %vm850 = vmor %vm754, %vm834
        %vm851 = vmor %vm755, %vm835
        %vm852 = vmor %vm756, %vm836
        %vm853 = vmor %vm757, %vm837
        %vm854 = vmor %vm758, %vm838
        %vm855 = vmor %vm759, %vm839
        %vm856 = vmor %vm760, %vm840
        %vm857 = vmor %vm761, %vm841
        %vm858 = vmor %vm762, %vm842
        %vm859 = vmor %vm763, %vm843
        %vm860 = vmor %vm764, %vm844
        %vm861 = vmor %vm765, %vm845
        %vm862 = vmor %vm766, %vm846
        %vm863 = vmor %vm767, %vm847
        %vm864 = vmor %vm768, %vm848
        %vm865 = vmor %vm769, %vm849
        %v866 = vsel %vm850, 1, 0
        %v867 = vsel %vm851, 1, 0
        %v868 = vsel %vm852, 1, 0
        %v869 = vsel %vm853, 1, 0
        %v870 = vsel %vm854, 1, 0
        %v871 = vsel %vm855, 1, 0
        %v872 = vsel %vm856, 1, 0
        %v873 = vsel %vm857, 1, 0
        %v874 = vsel %vm858, 1, 0
        %v875 = vsel %vm859, 1, 0
        %v876 = vsel %vm860, 1, 0
        %v877 = vsel %vm861, 1, 0
        %v878 = vsel %vm862, 1, 0
        %v879 = vsel %vm863, 1, 0
        %v880 = vsel %vm864, 1, 0
        %v881 = vsel %vm865, 1, 0
        %v882 = vcvt.s32.f32 %v866
        %v883 = vcvt.s32.f32 %v867
        %v884 = vcvt.s32.f32 %v868
        %v885 = vcvt.s32.f32 %v869
        %v886 = vcvt.s32.f32 %v870
        %v887 = vcvt.s32.f32 %v871
        %v888 = vcvt.s32.f32 %v872
        %v889 = vcvt.s32.f32 %v873
        %v890 = vcvt.s32.f32 %v874
        %v891 = vcvt.s32.f32 %v875
        %v892 = vcvt.s32.f32 %v876
        %v893 = vcvt.s32.f32 %v877
        %v894 = vcvt.s32.f32 %v878
        %v895 = vcvt.s32.f32 %v879
        %v896 = vcvt.s32.f32 %v880
        %v897 = vcvt.s32.f32 %v881
        %v898 = vpack.c.bf16 %v883, %v882
        %v899 = vpack.c.bf16 %v885, %v884
        %v900 = vpack.c.bf16 %v887, %v886
        %v901 = vpack.c.bf16 %v889, %v888
        %v902 = vpack.c.bf16 %v891, %v890
        %v903 = vpack.c.bf16 %v893, %v892
        %v904 = vpack.c.bf16 %v895, %v894
        %v905 = vpack.c.bf16 %v897, %v896
        %914 = vrot.lane.b32.xlu0 %v898, 21
        %v915 = vpop.permute.xlu0 %914
        %916 = vrot.lane.b32.xlu0 %v899, 21
        %v917 = vpop.permute.xlu0 %916
        %918 = vrot.lane.b32.xlu0 %v900, 21
        %v919 = vpop.permute.xlu0 %918
        %920 = vrot.lane.b32.xlu0 %v901, 21
        %v921 = vpop.permute.xlu0 %920
        %922 = vrot.lane.b32.xlu0 %v902, 21
        %v923 = vpop.permute.xlu0 %922
        %924 = vrot.lane.b32.xlu0 %v903, 21
        %v925 = vpop.permute.xlu0 %924
        %926 = vrot.lane.b32.xlu0 %v904, 21
        %v927 = vpop.permute.xlu0 %926
        %928 = vrot.lane.b32.xlu0 %v905, 21
        %v929 = vpop.permute.xlu0 %928
        %vm930 = vcmask 171008
        %v933 = vsel %vm930, %v488, %v915
        %v936 = vsel %vm930, %v489, %v917
        %v939 = vsel %vm930, %v490, %v919
        %v942 = vsel %vm930, %v491, %v921
        %v945 = vsel %vm930, %v492, %v923
        %v948 = vsel %vm930, %v493, %v925
        %v951 = vsel %vm930, %v494, %v927
        %v954 = vsel %vm930, %v495, %v929
        %v955 = vld [vmem:[%s2] sm:$0xf]
        %v956 = vld [vmem:[%s2 + $0x4] sm:$0xf]
        %v957 = vld [vmem:[%s2 + $0x8] sm:$0xf]
        %v958 = vld [vmem:[%s2 + $0xc] sm:$0xf]
        %v959 = vld [vmem:[%s2 + $0x10] sm:$0xf]
        %v960 = vld [vmem:[%s2 + $0x14] sm:$0xf]
        %v961 = vld [vmem:[%s2 + $0x18] sm:$0xf]
        %v962 = vld [vmem:[%s2 + $0x1c] sm:$0xf]
        %v963 = vld [vmem:[%s2 + $0x20] sm:$0xf]
        %v964 = vld [vmem:[%s2 + $0x24] sm:$0xf]
        %v965 = vld [vmem:[%s2 + $0x28] sm:$0xf]
        %v966 = vld [vmem:[%s2 + $0x2c] sm:$0xf]
        %v967 = vld [vmem:[%s2 + $0x30] sm:$0x1]
        %v981 = vunpack.c.l.b16 %v955
        %v982 = vunpack.c.l.b16 %v956
        %v983 = vunpack.c.l.b16 %v957
        %v984 = vunpack.c.l.b16 %v958
        %v985 = vunpack.c.l.b16 %v959
        %v986 = vunpack.c.l.b16 %v960
        %v987 = vunpack.c.l.b16 %v961
        %v988 = vunpack.c.l.b16 %v962
        %v989 = vunpack.c.l.b16 %v963
        %v990 = vunpack.c.l.b16 %v964
        %v991 = vunpack.c.l.b16 %v965
        %v992 = vunpack.c.l.b16 %v966
        %v993 = vunpack.c.l.b16 %v967
        %v994 = vpack.c.b16 %v982, %v981
        %v995 = vpack.c.b16 %v984, %v983
        %v996 = vpack.c.b16 %v986, %v985
        %v997 = vpack.c.b16 %v988, %v987
        %v998 = vpack.c.b16 %v990, %v989
        %v999 = vpack.c.b16 %v992, %v991
        %v1000 = vpack.c.b16 %v993, %v993
        %vm1007 = vcmask 793600
        %v1008 = vsel %vm1007, %v933, 0
        %v1010 = vsel %vm1007, %v936, 0
        %v1012 = vsel %vm1007, %v939, 0
        %v1014 = vsel %vm1007, %v942, 0
        %v1016 = vsel %vm1007, %v945, 0
        %v1018 = vsel %vm1007, %v948, 0
        %v1020 = vsel %vm1007, %v951, 0
        %v1022 = vsel %vm1007, %v954, 0
        %v1024 = vsel 0, 4294967295, 65535
        %v1025 = vsel %vm268, %v1024, 0
        %v1027 = vand.u32 %v1000, %v1025
        %1029 = vmatprep.subr.bf16.mxu0 0
        %1030 = vmatpush1.bf16.msra.mxu0 0
        %1031 = vmatprep.subr.bf16.mxu0 0
        %1032 = vmatpush1.bf16.msra.mxu0 %v1027
        %1033 = vmatprep.subr.bf16.mxu0 0
        %1034 = vmatpush1.bf16.msra.mxu0 %v999
        %1035 = vmatprep.subr.bf16.mxu0 0
        %1036 = vmatpush1.bf16.msra.mxu0 %v998
        %1037 = vmatprep.subr.bf16.mxu0 0
        %1038 = vmatpush1.bf16.msra.mxu0 %v997
        %1039 = vmatprep.subr.bf16.mxu0 0
        %1040 = vmatpush1.bf16.msra.mxu0 %v996
        %1041 = vmatprep.subr.bf16.mxu0 0
        %1042 = vmatpush1.bf16.msra.mxu0 %v995
        %1043 = vmatprep.subr.bf16.mxu0 0
        %1044 = vmatpush1.bf16.msra.mxu0 %v994
        %1045 = vmatprep.subr.bf16.mxu0 0
        %1046 = vmatpush2.bf16.msra.mxu0 0
        %1047 = vmatprep.subr.bf16.mxu0 0
        %1048 = vmatpush2.bf16.msra.mxu0 0
        %1049 = vmatprep.subr.bf16.mxu0 0
        %1050 = vmatpush2.bf16.msra.mxu0 0
        %1051 = vmatprep.subr.bf16.mxu0 0
        %1052 = vmatpush2.bf16.msra.mxu0 0
        %1053 = vmatprep.subr.bf16.mxu0 0
        %1054 = vmatpush2.bf16.msra.mxu0 0
        %1055 = vmatprep.subr.bf16.mxu0 0
        %1056 = vmatpush2.bf16.msra.mxu0 0
        %1057 = vmatprep.subr.bf16.mxu0 0
        %1058 = vmatpush2.bf16.msra.mxu0 0
        %1059 = vmatprep.subr.bf16.mxu0 0
        %1060 = vmatpush2.bf16.msra.mxu0 0
        %1061 = vmatprep.mubr.bf16.mxu0 0
        %1062 = vmatmul.mubr.bf16.gmra.mxu0 %v1008
        %v1063 = vpop.f32.mrf.mxu0
        %v1064 = vadd.f32 0.0, %v1063
        %v1065 = vpop.f32.mrf.mxu0
        %v1066 = vpop.f32.mrf.mxu0
        %v1067 = vadd.f32 0.0, %v1066
        %v1068 = vpop.f32.mrf.mxu0
        %1069 = vmatprep.mubr.bf16.mxu0 0
        %1070 = vmatmul.mubr.bf16.gmra.mxu0 %v1010
        %v1071 = vpop.f32.mrf.mxu0
        %v1072 = vadd.f32 0.0, %v1071
        %v1073 = vpop.f32.mrf.mxu0
        %v1074 = vpop.f32.mrf.mxu0
        %v1075 = vadd.f32 0.0, %v1074
        %v1076 = vpop.f32.mrf.mxu0
        %1077 = vmatprep.mubr.bf16.mxu0 0
        %1078 = vmatmul.mubr.bf16.gmra.mxu0 %v1012
        %v1079 = vpop.f32.mrf.mxu0
        %v1080 = vadd.f32 0.0, %v1079
        %v1081 = vpop.f32.mrf.mxu0
        %v1082 = vpop.f32.mrf.mxu0
        %v1083 = vadd.f32 0.0, %v1082
        %v1084 = vpop.f32.mrf.mxu0
        %1085 = vmatprep.mubr.bf16.mxu0 0
        %1086 = vmatmul.mubr.bf16.gmra.mxu0 %v1014
        %v1087 = vpop.f32.mrf.mxu0
        %v1088 = vadd.f32 0.0, %v1087
        %v1089 = vpop.f32.mrf.mxu0
        %v1090 = vpop.f32.mrf.mxu0
        %v1091 = vadd.f32 0.0, %v1090
        %v1092 = vpop.f32.mrf.mxu0
        %1093 = vmatprep.mubr.bf16.mxu0 0
        %1094 = vmatmul.mubr.bf16.gmra.mxu0 %v1016
        %v1095 = vpop.f32.mrf.mxu0
        %v1096 = vadd.f32 0.0, %v1095
        %v1097 = vpop.f32.mrf.mxu0
        %v1098 = vpop.f32.mrf.mxu0
        %v1099 = vadd.f32 0.0, %v1098
        %v1100 = vpop.f32.mrf.mxu0
        %1101 = vmatprep.mubr.bf16.mxu0 0
        %1102 = vmatmul.mubr.bf16.gmra.mxu0 %v1018
        %v1103 = vpop.f32.mrf.mxu0
        %v1104 = vadd.f32 0.0, %v1103
        %v1105 = vpop.f32.mrf.mxu0
        %v1106 = vpop.f32.mrf.mxu0
        %v1107 = vadd.f32 0.0, %v1106
        %v1108 = vpop.f32.mrf.mxu0
        %1109 = vmatprep.mubr.bf16.mxu0 0
        %1110 = vmatmul.mubr.bf16.gmra.mxu0 %v1020
        %v1111 = vpop.f32.mrf.mxu0
        %v1112 = vadd.f32 0.0, %v1111
        %v1113 = vpop.f32.mrf.mxu0
        %v1114 = vpop.f32.mrf.mxu0
        %v1115 = vadd.f32 0.0, %v1114
        %v1116 = vpop.f32.mrf.mxu0
        %1117 = vmatprep.mubr.bf16.mxu0 0
        %1118 = vmatmul.mubr.bf16.gmra.mxu0 %v1022
        %v1119 = vpop.f32.mrf.mxu0
        %v1120 = vadd.f32 0.0, %v1119
        %v1121 = vpop.f32.mrf.mxu0
        %v1122 = vpop.f32.mrf.mxu0
        %v1123 = vadd.f32 0.0, %v1122
        %v1124 = vpop.f32.mrf.mxu0
        %1125 = vdwg.mxu0
        %v1126 = vld [vmem:[%s3] sm:$0xff]
        %v1127 = vld [vmem:[%s3 + $0x8] sm:$0xff]
        %v1128 = vld [vmem:[%s3 + $0x10] sm:$0xff]
        %v1129 = vld [vmem:[%s3 + $0x18] sm:$0xff]
        %v1130 = vadd.f32 %v1064, %v1126
        %v1131 = vadd.f32 %v1067, %v1127
        %v1132 = vadd.f32 %v1072, %v1128
        %v1133 = vadd.f32 %v1075, %v1129
        %v1134 = vadd.f32 %v1080, %v1126
        %v1135 = vadd.f32 %v1083, %v1127
        %v1136 = vadd.f32 %v1088, %v1128
        %v1137 = vadd.f32 %v1091, %v1129
        %v1138 = vadd.f32 %v1096, %v1126
        %v1139 = vadd.f32 %v1099, %v1127
        %v1140 = vadd.f32 %v1104, %v1128
        %v1141 = vadd.f32 %v1107, %v1129
        %v1142 = vadd.f32 %v1112, %v1126
        %v1143 = vadd.f32 %v1115, %v1127
        %v1144 = vadd.f32 %v1120, %v1128
        %v1145 = vadd.f32 %v1123, %v1129
        %1146 = vst [vmem:[%s211] sm:$0xff] %v1130
        %1147 = vst [vmem:[%s211 + $0x8] sm:$0xff] %v1131
        %1148 = vst [vmem:[%s211 + $0x10] sm:$0xff] %v1132
        %1149 = vst [vmem:[%s211 + $0x18] sm:$0xff] %v1133
        %1150 = vst [vmem:[%s211 + $0x20] sm:$0xff] %v1134
        %1151 = vst [vmem:[%s211 + $0x28] sm:$0xff] %v1135
        %1152 = vst [vmem:[%s211 + $0x30] sm:$0xff] %v1136
        %1153 = vst [vmem:[%s211 + $0x38] sm:$0xff] %v1137
        %1154 = vst [vmem:[%s211 + $0x40] sm:$0xff] %v1138
        %1155 = vst [vmem:[%s211 + $0x48] sm:$0xff] %v1139
        %1156 = vst [vmem:[%s211 + $0x50] sm:$0xff] %v1140
        %1157 = vst [vmem:[%s211 + $0x58] sm:$0xff] %v1141
        %1158 = vst [vmem:[%s211 + $0x60] sm:$0xff] %v1142
        %1159 = vst [vmem:[%s211 + $0x68] sm:$0xff] %v1143
        %1160 = vst [vmem:[%s211 + $0x70] sm:$0xff] %v1144
        %1161 = vst [vmem:[%s211 + $0x78] sm:$0xff] %v1145
        %s1162 = sand.u32 %s120, 1
        %s1163 = scalar_lea.sflag [#allocation3], %s1162
        %s1164 = sand.u32 %s120, 1
        %s1165 = smul.addr %s1164, 128
        %s1166 = scalar_lea.vmem [#allocation2], %s1165
        // Predicated region
        $region37: #{tpu_custom_call.1} parent=35 // pred_check
          %p1167 = pneg %p130
        $region38: #{tpu_custom_call.1} parent=35 // pred_check_branch
          %1169 = sbr.rel (%p1167) target = $region40
        $region39: #{tpu_custom_call.1} parent=35 // pred_region
          %s1170 = smul.u32 4, %s18
          %s1172 = ssub.s32 2048, 2048
          %1173 = vsyncadd %s1163, %s1172
          %s1174 = smul.addr %s1170, 4
          %s1175 = smul.addr %s1174, 128
          %s1176 = scalar_lea.hbm %s4, %s1175
          %s1177 = sshll.u32 %s1166, 4
          %s1178 = int_to_ptr.vmem [resolvable:$true] %s1177
          %1183 = dma.vmem_to_hbm [thread:$0]  %s1178, 2048, %s1176, %s1163, 128, 128, 8
        $region40: #{tpu_custom_call.1} parent=35 // pred_fallthru
          _
      $region36: #{tpu_custom_call.1} parent=5 // pred_fallthru
        _
      %p1184 = scmp.le.s32.totalorder 2, %s13
      // Predicated region
      $region41: #{tpu_custom_call.1} parent=5 // pred_check
        %p1185 = pneg %p1184
      $region42: #{tpu_custom_call.1} parent=5 // pred_check_branch
        %1187 = sbr.rel (%p1185) target = $region44
      $region43: #{tpu_custom_call.1} parent=5 // pred_region
        %s1188 = ssub.s32 %s13, 2
        // Predicated region
        $region45: #{tpu_custom_call.1} parent=43 // pred_check
          %p1189 = pneg %p136
        $region46: #{tpu_custom_call.1} parent=43 // pred_check_branch
          %1191 = sbr.rel (%p1189) target = $region48
        $region47: #{tpu_custom_call.1} parent=43 // pred_region
          %s1192 = sand.u32 %s121, 1
          %s1193 = scalar_lea.sflag [#allocation3], %s1192
          %s1194 = sand.u32 %s121, 1
          %s1195 = smul.addr %s1194, 128
          %s1196 = scalar_lea.vmem [#allocation2], %s1195
          %1197 = dma.done %s1193, 2048
        $region48: #{tpu_custom_call.1} parent=43 // pred_fallthru
          _
      $region44: #{tpu_custom_call.1} parent=5 // pred_fallthru
        _
    $region6: #{tpu_custom_call.1} parent=1 // loop_footer
      %s17 = sadd.s32 1, %s13
    $region7: #{tpu_custom_call.1} parent=1 // loop_footer_branch
      %12 = sbr.rel target = $region3
    $region8: #{tpu_custom_call.1} parent=1 // loop_exit
      _
    %1198 = vsyncpa [#allocation3], 1
    %s1199 = scalar_lea.sflag [#allocation3], 1
    %1200 = vsyncpa %s1199, 1

</llo_original>
